<compile_context>
chip_gen: v5e
topology: v5e:2x2
jax: 0.10.0
libtpu: 0.0.40
codegen_flags: <defaults>
</compile_context>

<pallas_src>
import jax
import jax.numpy as jnp
from jax.experimental import pallas as pl
from jax.experimental.pallas import tpu as pltpu


def _round_up(x, m):
    return (x + m - 1) // m * m


def _choose_images_per_step(N, HW, Cp, budget_bytes=20 << 20):
    """Images per grid step: as many as fit a conservative VMEM budget, but keep
    >= 2 grid steps when N >= 2 so both v7x TensorCores get work."""
    # Rough per-image working set: double-buffered f32 in/out blocks (16*Cp*HW),
    # bf16 im2col slab (18*Cp*HW), f32 intermediates (~12*Cp*HW), masks (36*HW).
    per_img = HW * (Cp * (16 + 18 + 12) + 36)
    b = max(1, budget_bytes // per_img)
    if N >= 2:
        b = min(b, max(1, N // 2))
    return int(min(b, max(N, 1)))


def _make_kernel(H, W, Cp, images_per_step, use_im2col):
    HW = H * W
    L = images_per_step * HW          # lane extent of one grid step

    def kernel(x_ref, w1_ref, w2_ref, b1_ref, b2_ref, mask_ref, o_ref):
        # x_ref   : (Cp, L)      B images concatenated along the lane axis (f32)
        # w*_ref  : (Cp, 9*Cp)   BN-scale-folded conv weights, bf16, im2col layout
        # b*_ref  : (Cp, 1)      folded BN bias (f32)
        # mask_ref: (9, 1, L)    per-tap boundary masks, tiled per image (f32)
        # o_ref   : (Cp, L)      full padded-channel block (aligned, unmasked vst)
        x = x_ref[...]

        def masked_tap(src, tap):
            # Lane-roll so result[p] = src[p + (dy-1)*W + (dx-1)], then zero every
            # position whose tap lies outside its own image (this also removes
            # cross-image contamination from the lane concatenation and the
            # block-boundary wrap of the flat roll).
            dy, dx = tap // 3, tap % 3
            shift = ((1 - dy) * W + (1 - dx)) % L
            t = pltpu.roll(src, shift=shift, axis=1) if shift else src
            if tap != 4:                          # center tap needs no mask
                t = t * mask_ref[tap]
            return t

        def conv3x3_bn(src, w_ref, b_ref):
            if use_im2col:
                # Single MXU matmul: out (Cp, L) = W (Cp, 9*Cp) @ P^T (9*Cp, L).
                p_t = jnp.concatenate([masked_tap(src, t) for t in range(9)],
                                      axis=0)
                out = jnp.dot(w_ref[...], p_t.astype(jnp.bfloat16),
                              preferred_element_type=jnp.float32)
            else:
                # Large C*HW: 9 accumulating matmuls, never materialize the 9x
                # im2col slab (peak-VMEM friendly on v7x's 64 MiB).
                out = jnp.zeros((Cp, L), jnp.float32)
                for tap in range(9):
                    t = masked_tap(src, tap).astype(jnp.bfloat16)
                    w_tap = w_ref[:, tap * Cp:(tap + 1) * Cp]
                    out = out + jnp.dot(w_tap, t,
                                        preferred_element_type=jnp.float32)
            return out + b_ref[...]               # folded BN bias (f32)

        out1 = jnp.maximum(conv3x3_bn(x, w1_ref, b1_ref), 0.0)   # conv1+bn1+relu
        out2 = conv3x3_bn(out1, w2_ref, b2_ref)                  # conv2+bn2
        o_ref[...] = jnp.maximum(out2 + x, 0.0)                  # +identity, relu

    return kernel


def basic_block_forward(x_nchw, w1_oihw, w2_oihw, bn1, bn2, eps=1e-5):
    """BasicBlock forward. Assumes stride=1 and downsample=None (identity residual)."""
    N, C, H, W = x_nchw.shape
    assert w1_oihw.shape == (C, C, 3, 3) and w2_oihw.shape == (C, C, 3, 3), (
        "only stride=1 / downsample=None BasicBlock (in_planes == planes) supported")
    HW = H * W
    assert HW % 128 == 0, "H*W must be a multiple of 128 (lane axis)"
    Cp = _round_up(C, 8)                     # sublane-align the channel axis

    B = _choose_images_per_step(N, HW, Cp)   # images per grid step
    Np = _round_up(N, B)
    G = Np // B
    L = B * HW

    gamma1, beta1, mean1, var1 = bn1
    gamma2, beta2, mean2, var2 = bn2
    s1 = gamma1 / jnp.sqrt(var1 + eps)
    s2 = gamma2 / jnp.sqrt(var2 + eps)

    def fold_w(w_oihw, scale):
        # OIHW -> (O, kh, kw, I); fold BN scale per output channel; pad both
        # channel axes to Cp; flatten (kh, kw, I) into the contraction dim.
        # Cast to bf16: native MXU operand dtype on v5e/v6e/v7x.
        w = jnp.transpose(w_oihw, (0, 2, 3, 1)).astype(jnp.float32)
        w = w * scale.astype(jnp.float32)[:, None, None, None]
        if Cp != C:
            w = jnp.pad(w, ((0, Cp - C), (0, 0), (0, 0), (0, Cp - C)))
        return w.reshape(Cp, 9 * Cp).astype(jnp.bfloat16)

    def fold_b(beta, mean, scale):
        b = (beta - mean * scale).astype(jnp.float32)
        if Cp != C:
            b = jnp.pad(b, (0, Cp - C))
        return b.reshape(Cp, 1)

    w1 = fold_w(w1_oihw, s1)
    w2 = fold_w(w2_oihw, s2)
    b1 = fold_b(beta1, mean1, s1)
    b2 = fold_b(beta2, mean2, s2)

    # Activations: NCHW -> (Cp, Np*HW).  Images are concatenated along the lane
    # axis so every grid step presents a lane-dense (Cp, B*HW) slab to the MXU.
    x = x_nchw.astype(jnp.float32).reshape(N, C, HW)
    if Cp != C or Np != N:
        x = jnp.pad(x, ((0, Np - N), (0, Cp - C), (0, 0)))
    x = jnp.transpose(x, (1, 0, 2)).reshape(Cp, Np * HW)

    # Per-tap boundary masks for one image, tiled B times along the lane axis.
    yy, xx = jnp.meshgrid(jnp.arange(H), jnp.arange(W), indexing="ij")
    mask_list = []
    for dy in range(3):
        for dx in range(3):
            valid = ((yy + dy - 1 >= 0) & (yy + dy - 1 < H) &
                     (xx + dx - 1 >= 0) & (xx + dx - 1 < W))
            mask_list.append(valid.reshape(HW))
    masks = jnp.stack(mask_list).astype(jnp.float32)          # (9, HW)
    masks = jnp.tile(masks, (1, B)).reshape(9, 1, L)          # (9, 1, B*HW)

    # Use the single big im2col matmul while the 9x slab is small; switch to
    # 9 accumulating matmuls when it would stress VMEM (v7x: 64 MiB physical).
    use_im2col = (9 * Cp * L * 2) <= (8 << 20)

    cost = pl.CostEstimate(
        flops=4 * 9 * Np * HW * Cp * Cp,               # 2 convs x 2 flops/MAC
        transcendentals=0,
        bytes_accessed=(4 * Cp * Np * HW * 2            # activations in + out
                        + 2 * 2 * Cp * 9 * Cp           # bf16 weights
                        + 4 * (2 * Cp + 9 * L)))        # biases + masks

    const2 = lambda g: (0, 0)
    out = pl.pallas_call(
        _make_kernel(H, W, Cp, B, use_im2col),
        out_shape=jax.ShapeDtypeStruct((Cp, Np * HW), jnp.float32),
        grid=(G,),
        in_specs=[
            pl.BlockSpec((Cp, L), lambda g: (0, g)),                 # activations
            pl.BlockSpec((Cp, 9 * Cp), const2,
                         pipeline_mode=pl.Buffered(1)),              # folded w1
            pl.BlockSpec((Cp, 9 * Cp), const2,
                         pipeline_mode=pl.Buffered(1)),              # folded w2
            pl.BlockSpec((Cp, 1), const2,
                         pipeline_mode=pl.Buffered(1)),              # folded b1
            pl.BlockSpec((Cp, 1), const2,
                         pipeline_mode=pl.Buffered(1)),              # folded b2
            pl.BlockSpec((9, 1, L), lambda g: (0, 0, 0),
                         pipeline_mode=pl.Buffered(1)),              # masks
        ],
        out_specs=pl.BlockSpec((Cp, L), lambda g: (0, g)),
        compiler_params=pltpu.CompilerParams(
            dimension_semantics=("parallel",),
            vmem_limit_bytes=48 * 1024 * 1024),
        cost_estimate=cost,
    )(x, w1, w2, b1, b2, masks)

    # (Cp, Np*HW) -> (Np, Cp, HW) -> drop channel/batch padding -> NCHW.
    out = jnp.transpose(out.reshape(Cp, Np, HW), (1, 0, 2))
    return out[:N, :C].reshape(N, C, H, W)


def _reference_forward(x, w1, w2, bn1, bn2, eps=1e-5):
    """Pure-JAX reference (lax conv), NCHW in/out, inference-mode BN."""
    gamma1, beta1, mean1, var1 = bn1
    gamma2, beta2, mean2, var2 = bn2
    s1 = gamma1 / jnp.sqrt(var1 + eps)
    b1 = beta1 - mean1 * s1
    s2 = gamma2 / jnp.sqrt(var2 + eps)
    b2 = beta2 - mean2 * s2
    dn = ("NCHW", "OIHW", "NCHW")
    x = x.astype(jnp.float32)
    o = jax.lax.conv_general_dilated(x, w1.astype(jnp.float32), (1, 1), "SAME",
                                     dimension_numbers=dn)
    o = jnp.maximum(o * s1[None, :, None, None] + b1[None, :, None, None], 0.0)
    o = jax.lax.conv_general_dilated(o, w2.astype(jnp.float32), (1, 1), "SAME",
                                     dimension_numbers=dn)
    o = o * s2[None, :, None, None] + b2[None, :, None, None]
    return jnp.maximum(o + x, 0.0)


if __name__ == "__main__":
    key = jax.random.PRNGKey(0)
    ks = jax.random.split(key, 12)

    # BasicBlock(inplanes=4, planes=4, stride=1, downsample=None)
    N, C, H, W = 2, 4, 16, 16

    x = jax.random.normal(ks[0], (N, C, H, W), jnp.float32)
    # conv3x3 weights, PyTorch OIHW layout, bias=False
    w1 = 0.2 * jax.random.normal(ks[1], (C, C, 3, 3), jnp.float32)
    w2 = 0.2 * jax.random.normal(ks[2], (C, C, 3, 3), jnp.float32)
    # BatchNorm parameters (deterministic, non-trivial running stats)
    bn1 = (1.0 + 0.1 * jax.random.normal(ks[3], (C,), jnp.float32),   # gamma
           0.1 * jax.random.normal(ks[4], (C,), jnp.float32),         # beta
           0.05 * jax.random.normal(ks[5], (C,), jnp.float32),        # running_mean
           1.0 + 0.1 * jax.random.uniform(ks[6], (C,), jnp.float32))  # running_var
    bn2 = (1.0 + 0.1 * jax.random.normal(ks[7], (C,), jnp.float32),
           0.1 * jax.random.normal(ks[8], (C,), jnp.float32),
           0.05 * jax.random.normal(ks[9], (C,), jnp.float32),
           1.0 + 0.1 * jax.random.uniform(ks[10], (C,), jnp.float32))

    out = basic_block_forward(x, w1, w2, bn1, bn2)
    out = jax.block_until_ready(out)

    ref = _reference_forward(x, w1, w2, bn1, bn2)
    assert out.shape == (N, C, H, W)
    # bf16 MXU operands -> relaxed tolerance vs the f32 reference.
    assert jnp.allclose(out, ref, atol=5e-2, rtol=5e-2), (
        f"max abs err = {jnp.max(jnp.abs(out - ref))}")

    print("KERNEL_OK")
</pallas_src>

<mosaic_0001>
module attributes {stable_mosaic.version = 11 : i64} {
  func.func @kernel(%arg0: i32, %arg1: memref<8x256xf32, #tpu.memory_space<vmem>>, %arg2: memref<8x72xbf16, #tpu.memory_space<vmem>>, %arg3: memref<8x72xbf16, #tpu.memory_space<vmem>>, %arg4: memref<8x1xf32, #tpu.memory_space<vmem>>, %arg5: memref<8x1xf32, #tpu.memory_space<vmem>>, %arg6: memref<9x1x256xf32, #tpu.memory_space<vmem>>, %arg7: memref<8x256xf32, #tpu.memory_space<vmem>>) attributes {dimension_semantics = [#tpu.dimension_semantics<parallel>], iteration_bounds = array<i64: 2>, scalar_prefetch = 0 : i64, scratch_operands = 0 : i64, tpu.core_type = #tpu.core_type<tc>, window_params = [{transform_indices = @transform_0, window_bounds = array<i64: 8, 256>}, {pipeline_mode = #tpu.pipeline_mode<synchronous>, transform_indices = @transform_1, window_bounds = array<i64: 8, 72>}, {pipeline_mode = #tpu.pipeline_mode<synchronous>, transform_indices = @transform_2, window_bounds = array<i64: 8, 72>}, {pipeline_mode = #tpu.pipeline_mode<synchronous>, transform_indices = @transform_3, window_bounds = array<i64: 8, 1>}, {pipeline_mode = #tpu.pipeline_mode<synchronous>, transform_indices = @transform_4, window_bounds = array<i64: 8, 1>}, {pipeline_mode = #tpu.pipeline_mode<synchronous>, transform_indices = @transform_5, window_bounds = array<i64: 9, 1, 256>}, {transform_indices = @transform_6, window_bounds = array<i64: 8, 256>}]} {
    %c0 = arith.constant 0 : index
    %c0_0 = arith.constant 0 : index
    %0 = vector.load %arg1[%c0, %c0_0] : memref<8x256xf32, #tpu.memory_space<vmem>>, vector<8x256xf32>
    %c17_i32 = arith.constant 17 : i32
    %1 = tpu.dynamic_rotate %0 by %c17_i32 dim 1 : vector<8x256xf32>, i32 -> vector<8x256xf32>
    %c0_1 = arith.constant 0 : index
    %c0_2 = arith.constant 0 : index
    %c0_3 = arith.constant 0 : index
    %2 = vector.load %arg6[%c0_1, %c0_2, %c0_3] : memref<9x1x256xf32, #tpu.memory_space<vmem>>, vector<1x1x256xf32>
    %3 = vector.shape_cast %2 : vector<1x1x256xf32> to vector<1x256xf32>
    %4 = vector.broadcast %3 : vector<1x256xf32> to vector<8x256xf32>
    %5 = arith.mulf %1, %4 : vector<8x256xf32>
    %c16_i32 = arith.constant 16 : i32
    %6 = tpu.dynamic_rotate %0 by %c16_i32 dim 1 : vector<8x256xf32>, i32 -> vector<8x256xf32>
    %c1 = arith.constant 1 : index
    %c0_4 = arith.constant 0 : index
    %c0_5 = arith.constant 0 : index
    %7 = vector.load %arg6[%c1, %c0_4, %c0_5] : memref<9x1x256xf32, #tpu.memory_space<vmem>>, vector<1x1x256xf32>
    %8 = vector.shape_cast %7 : vector<1x1x256xf32> to vector<1x256xf32>
    %9 = vector.broadcast %8 : vector<1x256xf32> to vector<8x256xf32>
    %10 = arith.mulf %6, %9 : vector<8x256xf32>
    %c15_i32 = arith.constant 15 : i32
    %11 = tpu.dynamic_rotate %0 by %c15_i32 dim 1 : vector<8x256xf32>, i32 -> vector<8x256xf32>
    %c2 = arith.constant 2 : index
    %c0_6 = arith.constant 0 : index
    %c0_7 = arith.constant 0 : index
    %12 = vector.load %arg6[%c2, %c0_6, %c0_7] : memref<9x1x256xf32, #tpu.memory_space<vmem>>, vector<1x1x256xf32>
    %13 = vector.shape_cast %12 : vector<1x1x256xf32> to vector<1x256xf32>
    %14 = vector.broadcast %13 : vector<1x256xf32> to vector<8x256xf32>
    %15 = arith.mulf %11, %14 : vector<8x256xf32>
    %c1_i32 = arith.constant 1 : i32
    %16 = tpu.dynamic_rotate %0 by %c1_i32 dim 1 : vector<8x256xf32>, i32 -> vector<8x256xf32>
    %c3 = arith.constant 3 : index
    %c0_8 = arith.constant 0 : index
    %c0_9 = arith.constant 0 : index
    %17 = vector.load %arg6[%c3, %c0_8, %c0_9] : memref<9x1x256xf32, #tpu.memory_space<vmem>>, vector<1x1x256xf32>
    %18 = vector.shape_cast %17 : vector<1x1x256xf32> to vector<1x256xf32>
    %19 = vector.broadcast %18 : vector<1x256xf32> to vector<8x256xf32>
    %20 = arith.mulf %16, %19 : vector<8x256xf32>
    %c255_i32 = arith.constant 255 : i32
    %21 = tpu.dynamic_rotate %0 by %c255_i32 dim 1 : vector<8x256xf32>, i32 -> vector<8x256xf32>
    %c5 = arith.constant 5 : index
    %c0_10 = arith.constant 0 : index
    %c0_11 = arith.constant 0 : index
    %22 = vector.load %arg6[%c5, %c0_10, %c0_11] : memref<9x1x256xf32, #tpu.memory_space<vmem>>, vector<1x1x256xf32>
    %23 = vector.shape_cast %22 : vector<1x1x256xf32> to vector<1x256xf32>
    %24 = vector.broadcast %23 : vector<1x256xf32> to vector<8x256xf32>
    %25 = arith.mulf %21, %24 : vector<8x256xf32>
    %c241_i32 = arith.constant 241 : i32
    %26 = tpu.dynamic_rotate %0 by %c241_i32 dim 1 : vector<8x256xf32>, i32 -> vector<8x256xf32>
    %c6 = arith.constant 6 : index
    %c0_12 = arith.constant 0 : index
    %c0_13 = arith.constant 0 : index
    %27 = vector.load %arg6[%c6, %c0_12, %c0_13] : memref<9x1x256xf32, #tpu.memory_space<vmem>>, vector<1x1x256xf32>
    %28 = vector.shape_cast %27 : vector<1x1x256xf32> to vector<1x256xf32>
    %29 = vector.broadcast %28 : vector<1x256xf32> to vector<8x256xf32>
    %30 = arith.mulf %26, %29 : vector<8x256xf32>
    %c240_i32 = arith.constant 240 : i32
    %31 = tpu.dynamic_rotate %0 by %c240_i32 dim 1 : vector<8x256xf32>, i32 -> vector<8x256xf32>
    %c7 = arith.constant 7 : index
    %c0_14 = arith.constant 0 : index
    %c0_15 = arith.constant 0 : index
    %32 = vector.load %arg6[%c7, %c0_14, %c0_15] : memref<9x1x256xf32, #tpu.memory_space<vmem>>, vector<1x1x256xf32>
    %33 = vector.shape_cast %32 : vector<1x1x256xf32> to vector<1x256xf32>
    %34 = vector.broadcast %33 : vector<1x256xf32> to vector<8x256xf32>
    %35 = arith.mulf %31, %34 : vector<8x256xf32>
    %c239_i32 = arith.constant 239 : i32
    %36 = tpu.dynamic_rotate %0 by %c239_i32 dim 1 : vector<8x256xf32>, i32 -> vector<8x256xf32>
    %c8 = arith.constant 8 : index
    %c0_16 = arith.constant 0 : index
    %c0_17 = arith.constant 0 : index
    %37 = vector.load %arg6[%c8, %c0_16, %c0_17] : memref<9x1x256xf32, #tpu.memory_space<vmem>>, vector<1x1x256xf32>
    %38 = vector.shape_cast %37 : vector<1x1x256xf32> to vector<1x256xf32>
    %39 = vector.broadcast %38 : vector<1x256xf32> to vector<8x256xf32>
    %40 = arith.mulf %36, %39 : vector<8x256xf32>
    %41 = tpu.concatenate %5, %10, %15, %20, %0, %25, %30, %35, %40 in 0 : vector<8x256xf32>, vector<8x256xf32>, vector<8x256xf32>, vector<8x256xf32>, vector<8x256xf32>, vector<8x256xf32>, vector<8x256xf32>, vector<8x256xf32>, vector<8x256xf32> -> vector<72x256xf32>
    %c0_18 = arith.constant 0 : index
    %c0_19 = arith.constant 0 : index
    %42 = vector.load %arg2[%c0_18, %c0_19] : memref<8x72xbf16, #tpu.memory_space<vmem>>, vector<8x72xbf16>
    %43 = arith.truncf %41 : vector<72x256xf32> to vector<72x256xbf16>
    %cst = arith.constant dense<0.000000e+00> : vector<8x256xf32>
    %44 = tpu.matmul %42, %43, %cst {dimension_numbers = #tpu.dot_dimension_numbers<[1], [0], [0], [1], [0, 0, 1, 1], [], []>} : vector<8x72xbf16>, vector<72x256xbf16>, vector<8x256xf32> -> vector<8x256xf32>
    %c0_20 = arith.constant 0 : index
    %c0_21 = arith.constant 0 : index
    %45 = vector.load %arg4[%c0_20, %c0_21] : memref<8x1xf32, #tpu.memory_space<vmem>>, vector<8x1xf32>
    %46 = vector.broadcast %45 : vector<8x1xf32> to vector<8x256xf32>
    %47 = arith.addf %44, %46 : vector<8x256xf32>
    %cst_22 = arith.constant 0.000000e+00 : f32
    %48 = vector.broadcast %cst_22 : f32 to vector<8x256xf32>
    %49 = arith.maximumf %47, %48 : vector<8x256xf32>
    %c17_i32_23 = arith.constant 17 : i32
    %50 = tpu.dynamic_rotate %49 by %c17_i32_23 dim 1 : vector<8x256xf32>, i32 -> vector<8x256xf32>
    %c0_24 = arith.constant 0 : index
    %c0_25 = arith.constant 0 : index
    %c0_26 = arith.constant 0 : index
    %51 = vector.load %arg6[%c0_24, %c0_25, %c0_26] : memref<9x1x256xf32, #tpu.memory_space<vmem>>, vector<1x1x256xf32>
    %52 = vector.shape_cast %51 : vector<1x1x256xf32> to vector<1x256xf32>
    %53 = vector.broadcast %52 : vector<1x256xf32> to vector<8x256xf32>
    %54 = arith.mulf %50, %53 : vector<8x256xf32>
    %c16_i32_27 = arith.constant 16 : i32
    %55 = tpu.dynamic_rotate %49 by %c16_i32_27 dim 1 : vector<8x256xf32>, i32 -> vector<8x256xf32>
    %c1_28 = arith.constant 1 : index
    %c0_29 = arith.constant 0 : index
    %c0_30 = arith.constant 0 : index
    %56 = vector.load %arg6[%c1_28, %c0_29, %c0_30] : memref<9x1x256xf32, #tpu.memory_space<vmem>>, vector<1x1x256xf32>
    %57 = vector.shape_cast %56 : vector<1x1x256xf32> to vector<1x256xf32>
    %58 = vector.broadcast %57 : vector<1x256xf32> to vector<8x256xf32>
    %59 = arith.mulf %55, %58 : vector<8x256xf32>
    %c15_i32_31 = arith.constant 15 : i32
    %60 = tpu.dynamic_rotate %49 by %c15_i32_31 dim 1 : vector<8x256xf32>, i32 -> vector<8x256xf32>
    %c2_32 = arith.constant 2 : index
    %c0_33 = arith.constant 0 : index
    %c0_34 = arith.constant 0 : index
    %61 = vector.load %arg6[%c2_32, %c0_33, %c0_34] : memref<9x1x256xf32, #tpu.memory_space<vmem>>, vector<1x1x256xf32>
    %62 = vector.shape_cast %61 : vector<1x1x256xf32> to vector<1x256xf32>
    %63 = vector.broadcast %62 : vector<1x256xf32> to vector<8x256xf32>
    %64 = arith.mulf %60, %63 : vector<8x256xf32>
    %c1_i32_35 = arith.constant 1 : i32
    %65 = tpu.dynamic_rotate %49 by %c1_i32_35 dim 1 : vector<8x256xf32>, i32 -> vector<8x256xf32>
    %c3_36 = arith.constant 3 : index
    %c0_37 = arith.constant 0 : index
    %c0_38 = arith.constant 0 : index
    %66 = vector.load %arg6[%c3_36, %c0_37, %c0_38] : memref<9x1x256xf32, #tpu.memory_space<vmem>>, vector<1x1x256xf32>
    %67 = vector.shape_cast %66 : vector<1x1x256xf32> to vector<1x256xf32>
    %68 = vector.broadcast %67 : vector<1x256xf32> to vector<8x256xf32>
    %69 = arith.mulf %65, %68 : vector<8x256xf32>
    %c255_i32_39 = arith.constant 255 : i32
    %70 = tpu.dynamic_rotate %49 by %c255_i32_39 dim 1 : vector<8x256xf32>, i32 -> vector<8x256xf32>
    %c5_40 = arith.constant 5 : index
    %c0_41 = arith.constant 0 : index
    %c0_42 = arith.constant 0 : index
    %71 = vector.load %arg6[%c5_40, %c0_41, %c0_42] : memref<9x1x256xf32, #tpu.memory_space<vmem>>, vector<1x1x256xf32>
    %72 = vector.shape_cast %71 : vector<1x1x256xf32> to vector<1x256xf32>
    %73 = vector.broadcast %72 : vector<1x256xf32> to vector<8x256xf32>
    %74 = arith.mulf %70, %73 : vector<8x256xf32>
    %c241_i32_43 = arith.constant 241 : i32
    %75 = tpu.dynamic_rotate %49 by %c241_i32_43 dim 1 : vector<8x256xf32>, i32 -> vector<8x256xf32>
    %c6_44 = arith.constant 6 : index
    %c0_45 = arith.constant 0 : index
    %c0_46 = arith.constant 0 : index
    %76 = vector.load %arg6[%c6_44, %c0_45, %c0_46] : memref<9x1x256xf32, #tpu.memory_space<vmem>>, vector<1x1x256xf32>
    %77 = vector.shape_cast %76 : vector<1x1x256xf32> to vector<1x256xf32>
    %78 = vector.broadcast %77 : vector<1x256xf32> to vector<8x256xf32>
    %79 = arith.mulf %75, %78 : vector<8x256xf32>
    %c240_i32_47 = arith.constant 240 : i32
    %80 = tpu.dynamic_rotate %49 by %c240_i32_47 dim 1 : vector<8x256xf32>, i32 -> vector<8x256xf32>
    %c7_48 = arith.constant 7 : index
    %c0_49 = arith.constant 0 : index
    %c0_50 = arith.constant 0 : index
    %81 = vector.load %arg6[%c7_48, %c0_49, %c0_50] : memref<9x1x256xf32, #tpu.memory_space<vmem>>, vector<1x1x256xf32>
    %82 = vector.shape_cast %81 : vector<1x1x256xf32> to vector<1x256xf32>
    %83 = vector.broadcast %82 : vector<1x256xf32> to vector<8x256xf32>
    %84 = arith.mulf %80, %83 : vector<8x256xf32>
    %c239_i32_51 = arith.constant 239 : i32
    %85 = tpu.dynamic_rotate %49 by %c239_i32_51 dim 1 : vector<8x256xf32>, i32 -> vector<8x256xf32>
    %c8_52 = arith.constant 8 : index
    %c0_53 = arith.constant 0 : index
    %c0_54 = arith.constant 0 : index
    %86 = vector.load %arg6[%c8_52, %c0_53, %c0_54] : memref<9x1x256xf32, #tpu.memory_space<vmem>>, vector<1x1x256xf32>
    %87 = vector.shape_cast %86 : vector<1x1x256xf32> to vector<1x256xf32>
    %88 = vector.broadcast %87 : vector<1x256xf32> to vector<8x256xf32>
    %89 = arith.mulf %85, %88 : vector<8x256xf32>
    %90 = tpu.concatenate %54, %59, %64, %69, %49, %74, %79, %84, %89 in 0 : vector<8x256xf32>, vector<8x256xf32>, vector<8x256xf32>, vector<8x256xf32>, vector<8x256xf32>, vector<8x256xf32>, vector<8x256xf32>, vector<8x256xf32>, vector<8x256xf32> -> vector<72x256xf32>
    %c0_55 = arith.constant 0 : index
    %c0_56 = arith.constant 0 : index
    %91 = vector.load %arg3[%c0_55, %c0_56] : memref<8x72xbf16, #tpu.memory_space<vmem>>, vector<8x72xbf16>
    %92 = arith.truncf %90 : vector<72x256xf32> to vector<72x256xbf16>
    %cst_57 = arith.constant dense<0.000000e+00> : vector<8x256xf32>
    %93 = tpu.matmul %91, %92, %cst_57 {dimension_numbers = #tpu.dot_dimension_numbers<[1], [0], [0], [1], [0, 0, 1, 1], [], []>} : vector<8x72xbf16>, vector<72x256xbf16>, vector<8x256xf32> -> vector<8x256xf32>
    %c0_58 = arith.constant 0 : index
    %c0_59 = arith.constant 0 : index
    %94 = vector.load %arg5[%c0_58, %c0_59] : memref<8x1xf32, #tpu.memory_space<vmem>>, vector<8x1xf32>
    %95 = vector.broadcast %94 : vector<8x1xf32> to vector<8x256xf32>
    %96 = arith.addf %93, %95 : vector<8x256xf32>
    %97 = arith.addf %96, %0 : vector<8x256xf32>
    %cst_60 = arith.constant 0.000000e+00 : f32
    %98 = vector.broadcast %cst_60 : f32 to vector<8x256xf32>
    %99 = arith.maximumf %97, %98 : vector<8x256xf32>
    %c0_61 = arith.constant 0 : index
    %c0_62 = arith.constant 0 : index
    %100 = vector.load %arg7[%c0_61, %c0_62] : memref<8x256xf32, #tpu.memory_space<vmem>>, vector<8x256xf32>
    tpu.vector_store %arg7[%c0_61, %c0_62], %99 {strides = array<i32>} : memref<8x256xf32, #tpu.memory_space<vmem>>, vector<8x256xf32>,
    return
  }
  func.func @transform_0(%arg0: i32) -> (i32, i32) {
    %c0_i32 = arith.constant 0 : i32
    %c0_i32_0 = arith.constant 0 : i32
    return %c0_i32, %arg0 : i32, i32
  }
  func.func @transform_1(%arg0: i32) -> (i32, i32) {
    %c0_i32 = arith.constant 0 : i32
    %c0_i32_0 = arith.constant 0 : i32
    %c0_i32_1 = arith.constant 0 : i32
    return %c0_i32, %c0_i32_0 : i32, i32
  }
  func.func @transform_2(%arg0: i32) -> (i32, i32) {
    %c0_i32 = arith.constant 0 : i32
    %c0_i32_0 = arith.constant 0 : i32
    %c0_i32_1 = arith.constant 0 : i32
    return %c0_i32, %c0_i32_0 : i32, i32
  }
  func.func @transform_3(%arg0: i32) -> (i32, i32) {
    %c0_i32 = arith.constant 0 : i32
    %c0_i32_0 = arith.constant 0 : i32
    %c0_i32_1 = arith.constant 0 : i32
    return %c0_i32, %c0_i32_0 : i32, i32
  }
  func.func @transform_4(%arg0: i32) -> (i32, i32) {
    %c0_i32 = arith.constant 0 : i32
    %c0_i32_0 = arith.constant 0 : i32
    %c0_i32_1 = arith.constant 0 : i32
    return %c0_i32, %c0_i32_0 : i32, i32
  }
  func.func @transform_5(%arg0: i32) -> (i32, i32, i32) {
    %c0_i32 = arith.constant 0 : i32
    %c0_i32_0 = arith.constant 0 : i32
    %c0_i32_1 = arith.constant 0 : i32
    %c0_i32_2 = arith.constant 0 : i32
    return %c0_i32, %c0_i32_0, %c0_i32_1 : i32, i32, i32
  }
  func.func @transform_6(%arg0: i32) -> (i32, i32) {
    %c0_i32 = arith.constant 0 : i32
    %c0_i32_0 = arith.constant 0 : i32
    return %c0_i32, %arg0 : i32, i32
  }
}

</mosaic_0001>

<llo_original>
// kernel: tpu_custom_call.1
$region0: #{tpu_custom_call.1}
  #allocation0 [shape = 'u32[]', space=smem, size = 0x4, offset = 0x4, fixed_abs, tag = 'smem constant byte address 0x4 - core index']
  #allocation1 [shape = 'u32[72,128]{1,0:T(1,128)}', space=vmem, size = 0x9000, scoped, tag = 'internal scratch']
  %s0 = inlined_call_operand.hbm [shape: f32[8,512], index: 0, kind: input, shape index: {}]
  %s1 = inlined_call_operand.vmem [shape: bf16[8,72], index: 1, kind: input, shape index: {}]
  %s2 = inlined_call_operand.hbm [shape: bf16[8,72], index: 2, kind: input, shape index: {}]
  %s3 = inlined_call_operand.vmem [shape: f32[8,1], index: 3, kind: input, shape index: {}]
  %s4 = inlined_call_operand.vmem [shape: f32[8,1], index: 4, kind: input, shape index: {}]
  %s5 = inlined_call_operand.vmem [shape: f32[9,1,256], index: 5, kind: input, shape index: {}]
  %s6 = inlined_call_operand.hbm [shape: f32[8,512], index: 6, kind: output, shape index: {}]
  %s7 = sld [smem:[#allocation0]]
  $region65: #{tpu_custom_call.1} parent=0
    _
  %s9 = ssub.s32 1, %s7
  %s10 = scalar_select 0, %s9, %s7
  $region1: #{tpu_custom_call.1} parent=0
    #allocation2 [shape = 'u8[16384]{0}', space=vmem, size = 0x4000, scoped, tag = 'input window, operand 0']
    #allocation3 [shape = 's32[2]{0}', space=sflag, size = 0x8, scoped, tag = 'scoped memory for tpu_custom_call.1']
    #allocation4 [shape = 's32[2]{0}', space=sflag, size = 0x8, scoped, tag = 'scoped memory for tpu_custom_call.1']
    #allocation5 [shape = 'u8[2048]{0}', space=vmem, size = 0x800, scoped, tag = 'input window, operand 2, single buffered']
    #allocation6 [shape = 's32[1]{0}', space=sflag, size = 0x4, scoped, tag = 'scoped memory for tpu_custom_call.1']
    #allocation7 [shape = 'u8[16384]{0}', space=vmem, size = 0x4000, scoped, tag = 'output window, operand 0']
    %11 = vsyncpa [#allocation3], 0
    %s12 = scalar_lea.sflag [#allocation3], 1
    %13 = vsyncpa %s12, 0
    %14 = vsyncpa [#allocation6], 0
    %15 = vsyncpa [#allocation4], 0
    %s16 = scalar_lea.sflag [#allocation4], 1
    %17 = vsyncpa %s16, 0
    loop: start=0, step=1, limit=4
    $region2: #{tpu_custom_call.1} parent=1 // loop_pre_header
      _
    $region3: #{tpu_custom_call.1} parent=1 // loop_header
      %s19 = sphi 0, %s23
      %p20 = scmp.ge.s32.totalorder %s19, 4
      %s29 = sphi 0, %s31
      %s32 = sphi 0, %s29
      %s33 = sphi 0, %s32
      %s49 = sphi 0, %s33
      %s53 = sphi 0, %s53
      %s55 = sphi 0, %s53
      %s56 = sphi 0, %s55
      %s70 = sphi 0, %s56
      %s74 = sphi 0, %s74
      %s76 = sphi 0, %s74
      %s77 = sphi 0, %s76
      %s91 = sphi 0, %s77
      %s95 = sphi 0, %s95
      %s97 = sphi 0, %s95
      %s98 = sphi 0, %s97
      %s112 = sphi 0, %s98
      %s116 = sphi 0, %s116
      %s118 = sphi 0, %s116
      %s119 = sphi 0, %s118
      %s133 = sphi 0, %s119
      %s137 = sphi 0, %s137
      %s139 = sphi 0, %s137
      %s140 = sphi 0, %s139
      %s154 = sphi 0, %s140
      %s160 = sphi 0, %s162
      %s163 = sphi 0, %s160
      %s164 = sphi 0, %s163
      %s180 = sphi 0, %s164
    $region4: #{tpu_custom_call.1} parent=1 // loop_header_branch
      %22 = sbr.rel (%p20) target = $region8
    $region5: #{tpu_custom_call.1} parent=1 // loop_body
      %s24 = ssub.s32 %s19, 1
      %s25 = ssub.s32 %s19, 2
      %s26 = sadd.s32 %s19, 1
      %s27 = ssub.s32 %s19, %s26
      %p28 = scmp.eq.s32.totalorder %s27, 0
      %s30 = sadd.s32 %s29, 1
      %s31 = scalar_select %p28, %s29, %s30
      %p34 = pneg %p28
      %p35 = scmp.eq.s32.totalorder %s19, 1
      %p36 = por %p34, %p35
      %p37 = scmp.ne.s32.totalorder %s29, %s32
      %p38 = scmp.eq.s32.totalorder %s19, 0
      %p39 = por %p37, %p38
      %p40 = scmp.ne.s32.totalorder %s29, %s32
      %p41 = scmp.eq.s32.totalorder %s24, 1
      %p42 = por %p40, %p41
      %p43 = scmp.ne.s32.totalorder %s32, %s33
      %p44 = scmp.eq.s32.totalorder %s24, 0
      %p45 = por %p43, %p44
      %p46 = scmp.ne.s32.totalorder %s32, %s33
      %p47 = scmp.eq.s32.totalorder %s25, 1
      %p48 = por %p46, %p47
      %p50 = scmp.ne.s32.totalorder %s33, %s49
      %p51 = scmp.eq.s32.totalorder %s25, 0
      %p52 = por %p50, %p51
      %s54 = sadd.s32 %s53, 1
      %p57 = scmp.eq.s32.totalorder %s19, 1
      %p58 = scmp.ne.s32.totalorder %s53, %s55
      %p59 = scmp.eq.s32.totalorder %s19, 0
      %p60 = por %p58, %p59
      %p61 = scmp.ne.s32.totalorder %s53, %s55
      %p62 = scmp.eq.s32.totalorder %s24, 1
      %p63 = por %p61, %p62
      %p64 = scmp.ne.s32.totalorder %s55, %s56
      %p65 = scmp.eq.s32.totalorder %s24, 0
      %p66 = por %p64, %p65
      %p67 = scmp.ne.s32.totalorder %s55, %s56
      %p68 = scmp.eq.s32.totalorder %s25, 1
      %p69 = por %p67, %p68
      %p71 = scmp.ne.s32.totalorder %s56, %s70
      %p72 = scmp.eq.s32.totalorder %s25, 0
      %p73 = por %p71, %p72
      %s75 = sadd.s32 %s74, 1
      %p78 = scmp.eq.s32.totalorder %s19, 1
      %p79 = scmp.ne.s32.totalorder %s74, %s76
      %p80 = scmp.eq.s32.totalorder %s19, 0
      %p81 = por %p79, %p80
      %p82 = scmp.ne.s32.totalorder %s74, %s76
      %p83 = scmp.eq.s32.totalorder %s24, 1
      %p84 = por %p82, %p83
      %p85 = scmp.ne.s32.totalorder %s76, %s77
      %p86 = scmp.eq.s32.totalorder %s24, 0
      %p87 = por %p85, %p86
      %p88 = scmp.ne.s32.totalorder %s76, %s77
      %p89 = scmp.eq.s32.totalorder %s25, 1
      %p90 = por %p88, %p89
      %p92 = scmp.ne.s32.totalorder %s77, %s91
      %p93 = scmp.eq.s32.totalorder %s25, 0
      %p94 = por %p92, %p93
      %s96 = sadd.s32 %s95, 1
      %p99 = scmp.eq.s32.totalorder %s19, 1
      %p100 = scmp.ne.s32.totalorder %s95, %s97
      %p101 = scmp.eq.s32.totalorder %s19, 0
      %p102 = por %p100, %p101
      %p103 = scmp.ne.s32.totalorder %s95, %s97
      %p104 = scmp.eq.s32.totalorder %s24, 1
      %p105 = por %p103, %p104
      %p106 = scmp.ne.s32.totalorder %s97, %s98
      %p107 = scmp.eq.s32.totalorder %s24, 0
      %p108 = por %p106, %p107
      %p109 = scmp.ne.s32.totalorder %s97, %s98
      %p110 = scmp.eq.s32.totalorder %s25, 1
      %p111 = por %p109, %p110
      %p113 = scmp.ne.s32.totalorder %s98, %s112
      %p114 = scmp.eq.s32.totalorder %s25, 0
      %p115 = por %p113, %p114
      %s117 = sadd.s32 %s116, 1
      %p120 = scmp.eq.s32.totalorder %s19, 1
      %p121 = scmp.ne.s32.totalorder %s116, %s118
      %p122 = scmp.eq.s32.totalorder %s19, 0
      %p123 = por %p121, %p122
      %p124 = scmp.ne.s32.totalorder %s116, %s118
      %p125 = scmp.eq.s32.totalorder %s24, 1
      %p126 = por %p124, %p125
      %p127 = scmp.ne.s32.totalorder %s118, %s119
      %p128 = scmp.eq.s32.totalorder %s24, 0
      %p129 = por %p127, %p128
      %p130 = scmp.ne.s32.totalorder %s118, %s119
      %p131 = scmp.eq.s32.totalorder %s25, 1
      %p132 = por %p130, %p131
      %p134 = scmp.ne.s32.totalorder %s119, %s133
      %p135 = scmp.eq.s32.totalorder %s25, 0
      %p136 = por %p134, %p135
      %s138 = sadd.s32 %s137, 1
      %p141 = scmp.eq.s32.totalorder %s19, 1
      %p142 = scmp.ne.s32.totalorder %s137, %s139
      %p143 = scmp.eq.s32.totalorder %s19, 0
      %p144 = por %p142, %p143
      %p145 = scmp.ne.s32.totalorder %s137, %s139
      %p146 = scmp.eq.s32.totalorder %s24, 1
      %p147 = por %p145, %p146
      %p148 = scmp.ne.s32.totalorder %s139, %s140
      %p149 = scmp.eq.s32.totalorder %s24, 0
      %p150 = por %p148, %p149
      %p151 = scmp.ne.s32.totalorder %s139, %s140
      %p152 = scmp.eq.s32.totalorder %s25, 1
      %p153 = por %p151, %p152
      %p155 = scmp.ne.s32.totalorder %s140, %s154
      %p156 = scmp.eq.s32.totalorder %s25, 0
      %p157 = por %p155, %p156
      %s158 = ssub.s32 %s19, %s26
      %p159 = scmp.eq.s32.totalorder %s158, 0
      %s161 = sadd.s32 %s160, 1
      %s162 = scalar_select %p159, %s160, %s161
      %p165 = pneg %p159
      %p166 = scmp.eq.s32.totalorder %s19, 1
      %p167 = por %p165, %p166
      %p168 = scmp.ne.s32.totalorder %s160, %s163
      %p169 = scmp.eq.s32.totalorder %s19, 0
      %p170 = por %p168, %p169
      %p171 = scmp.ne.s32.totalorder %s160, %s163
      %p172 = scmp.eq.s32.totalorder %s24, 1
      %p173 = por %p171, %p172
      %p174 = scmp.ne.s32.totalorder %s163, %s164
      %p175 = scmp.eq.s32.totalorder %s24, 0
      %p176 = por %p174, %p175
      %p177 = scmp.ne.s32.totalorder %s163, %s164
      %p178 = scmp.eq.s32.totalorder %s25, 1
      %p179 = por %p177, %p178
      %p181 = scmp.ne.s32.totalorder %s164, %s180
      %p182 = scmp.eq.s32.totalorder %s25, 0
      %p183 = por %p181, %p182
      %p184 = scmp.le.s32.totalorder 1, %s19
      %p185 = scmp.lt.s32.totalorder %s19, 3
      %p186 = pnand %p184, %p185
      %p187 = pneg %p186
      // Predicated region
      $region9: #{tpu_custom_call.1} parent=5 // pred_check
        _
      $region10: #{tpu_custom_call.1} parent=5 // pred_check_branch
        %189 = sbr.rel (%p186) target = $region12
      $region11: #{tpu_custom_call.1} parent=5 // pred_region
        %s190 = ssub.s32 %s19, 1
        // Predicated region
        $region13: #{tpu_custom_call.1} parent=11 // pred_check
          %p191 = pneg %p66
        $region14: #{tpu_custom_call.1} parent=11 // pred_check_branch
          %193 = sbr.rel (%p191) target = $region16
        $region15: #{tpu_custom_call.1} parent=11 // pred_region
          _
        $region16: #{tpu_custom_call.1} parent=11 // pred_fallthru
          _
        // Predicated region
        $region17: #{tpu_custom_call.1} parent=11 // pred_check
          %p194 = pneg %p87
        $region18: #{tpu_custom_call.1} parent=11 // pred_check_branch
          %196 = sbr.rel (%p194) target = $region20
        $region19: #{tpu_custom_call.1} parent=11 // pred_region
          %198 = vsyncadd [#allocation6], 0
          %s200 = sshll.u32 %s2, 4
          %s201 = int_to_ptr.hbm [resolvable:$true] %s200
          %s202 = sshll.u32 [#allocation5], 4
          %s203 = int_to_ptr.vmem [resolvable:$true] %s202
          %205 = dma.hbm_to_vmem [thread:$0]  %s201, 64, %s203, [#allocation6]
        $region20: #{tpu_custom_call.1} parent=11 // pred_fallthru
          _
        // Predicated region
        $region21: #{tpu_custom_call.1} parent=11 // pred_check
          %p206 = pneg %p108
        $region22: #{tpu_custom_call.1} parent=11 // pred_check_branch
          %208 = sbr.rel (%p206) target = $region24
        $region23: #{tpu_custom_call.1} parent=11 // pred_region
          _
        $region24: #{tpu_custom_call.1} parent=11 // pred_fallthru
          _
        // Predicated region
        $region25: #{tpu_custom_call.1} parent=11 // pred_check
          %p209 = pneg %p129
        $region26: #{tpu_custom_call.1} parent=11 // pred_check_branch
          %211 = sbr.rel (%p209) target = $region28
        $region27: #{tpu_custom_call.1} parent=11 // pred_region
          _
        $region28: #{tpu_custom_call.1} parent=11 // pred_fallthru
          _
        // Predicated region
        $region29: #{tpu_custom_call.1} parent=11 // pred_check
          %p212 = pneg %p150
        $region30: #{tpu_custom_call.1} parent=11 // pred_check_branch
          %214 = sbr.rel (%p212) target = $region32
        $region31: #{tpu_custom_call.1} parent=11 // pred_region
          _
        $region32: #{tpu_custom_call.1} parent=11 // pred_fallthru
          _
      $region12: #{tpu_custom_call.1} parent=5 // pred_fallthru
        _
      %p215 = scmp.lt.s32.totalorder %s19, 2
      // Predicated region
      $region33: #{tpu_custom_call.1} parent=5 // pred_check
        %p216 = pneg %p215
      $region34: #{tpu_custom_call.1} parent=5 // pred_check_branch
        %218 = sbr.rel (%p216) target = $region36
      $region35: #{tpu_custom_call.1} parent=5 // pred_region
        // Predicated region
        $region37: #{tpu_custom_call.1} parent=35 // pred_check
          %p219 = pneg %p39
        $region38: #{tpu_custom_call.1} parent=35 // pred_check_branch
          %221 = sbr.rel (%p219) target = $region40
        $region39: #{tpu_custom_call.1} parent=35 // pred_region
          %s222 = sand.u32 %s29, 1
          %s223 = scalar_lea.sflag [#allocation3], %s222
          %s224 = sand.u32 %s29, 1
          %s225 = smul.addr %s224, 16
          %s226 = scalar_lea.vmem [#allocation2], %s225
          %s227 = smul.u32 2, %s19
          %229 = vsyncadd %s223, 0
          %s230 = smul.addr %s227, 8
          %s231 = scalar_lea.hbm %s0, %s230
          %s233 = sshll.u32 %s231, 4
          %s234 = int_to_ptr.hbm [resolvable:$true] %s233
          %s235 = sshll.u32 %s226, 4
          %s236 = int_to_ptr.vmem [resolvable:$true] %s235
          %238 = dma.hbm_to_vmem [thread:$0]  %s234, 256, %s236, %s223
        $region40: #{tpu_custom_call.1} parent=35 // pred_fallthru
          _
      $region36: #{tpu_custom_call.1} parent=5 // pred_fallthru
        _
      %p239 = scmp.le.s32.totalorder 1, %s19
      %p240 = scmp.lt.s32.totalorder %s19, 3
      %p241 = pnand %p239, %p240
      %p242 = pneg %p241
      // Predicated region
      $region41: #{tpu_custom_call.1} parent=5 // pred_check
        _
      $region42: #{tpu_custom_call.1} parent=5 // pred_check_branch
        %244 = sbr.rel (%p241) target = $region44
      $region43: #{tpu_custom_call.1} parent=5 // pred_region
        %s245 = ssub.s32 %s19, 1
        %s246 = sand.u32 %s32, 1
        %s247 = scalar_lea.sflag [#allocation3], %s246
        %s248 = sand.u32 %s32, 1
        %s249 = smul.addr %s248, 16
        %s250 = scalar_lea.vmem [#allocation2], %s249
        // Predicated region
        $region45: #{tpu_custom_call.1} parent=43 // pred_check
          %p251 = pneg %p45
        $region46: #{tpu_custom_call.1} parent=43 // pred_check_branch
          %253 = sbr.rel (%p251) target = $region48
        $region47: #{tpu_custom_call.1} parent=43 // pred_region
          %255 = dma.done %s247, 256
        $region48: #{tpu_custom_call.1} parent=43 // pred_fallthru
          _
        // Predicated region
        $region49: #{tpu_custom_call.1} parent=43 // pred_check
          %p256 = pneg %p87
        $region50: #{tpu_custom_call.1} parent=43 // pred_check_branch
          %258 = sbr.rel (%p256) target = $region52
        $region51: #{tpu_custom_call.1} parent=43 // pred_region
          %260 = dma.done [#allocation6], 64
        $region52: #{tpu_custom_call.1} parent=43 // pred_fallthru
          _
        %s261 = sand.u32 %s32, 1
        %s262 = scalar_lea.sflag [#allocation3], %s261
        %s263 = sand.u32 %s32, 1
        %s264 = smul.addr %s263, 16
        %s265 = scalar_lea.vmem [#allocation2], %s264
        %p266 = pneg %p45
        %p267 = pneg %p42
        %p268 = pneg %p66
        %p269 = pneg %p63
        %p270 = pneg %p87
        %p271 = pneg %p84
        %p272 = pneg %p108
        %p273 = pneg %p105
        %p274 = pneg %p129
        %p275 = pneg %p126
        %p276 = pneg %p150
        %p277 = pneg %p147
        %p278 = pneg %p176
        %p279 = pneg %p173
        %s280 = sand.u32 %s163, 1
        %s281 = scalar_lea.sflag [#allocation4], %s280
        %s282 = sand.u32 %s163, 1
        %s283 = smul.addr %s282, 16
        %s284 = scalar_lea.vmem [#allocation7], %s283
        %s285 = smul.u32 2, %s24
        %s286 = smul.u32 2, %s24
        %v288 = vld [vmem:[%s250] sm:$0xff]
        %v289 = vld [vmem:[%s250 + $0x8] sm:$0xff]
        %290 = vrot.lane.b32.xlu0 %v288, 17
        %v291 = vpop.permute.xlu0 %290
        %292 = vrot.lane.b32.xlu0 %v289, 17
        %v293 = vpop.permute.xlu0 %292
        %v294 = vlaneseq
        %v295 = vand.u32 %v294, 127
        %vm296 = vcmp.lt.s32.totalorder %v295, 17
        %v297 = vsel %vm296, %v291, %v293
        %v298 = vsel %vm296, %v293, %v291
        %v299 = vld [vmem:[%s5] sm:$0x3]
        %v301 = vperm.slane %v299, 0
        %v302 = vperm.slane %v299, 1
        %v305 = vmul.f32 %v298, %v301
        %v306 = vmul.f32 %v297, %v302
        %307 = vrot.lane.b32.xlu0 %v288, 16
        %v308 = vpop.permute.xlu0 %307
        %309 = vrot.lane.b32.xlu0 %v289, 16
        %v310 = vpop.permute.xlu0 %309
        %vm311 = vcmp.lt.s32.totalorder %v295, 16
        %v312 = vsel %vm311, %v308, %v310
        %v313 = vsel %vm311, %v310, %v308
        %s314 = scalar_lea.vmem %s5, 2
        %v315 = vld [vmem:[%s314] sm:$0x3]
        %v317 = vperm.slane %v315, 0
        %v318 = vperm.slane %v315, 1
        %v321 = vmul.f32 %v313, %v317
        %v322 = vmul.f32 %v312, %v318
        %323 = vrot.lane.b32.xlu0 %v288, 15
        %v324 = vpop.permute.xlu0 %323
        %325 = vrot.lane.b32.xlu0 %v289, 15
        %v326 = vpop.permute.xlu0 %325
        %vm327 = vcmp.lt.s32.totalorder %v295, 15
        %v328 = vsel %vm327, %v324, %v326
        %v329 = vsel %vm327, %v326, %v324
        %s330 = scalar_lea.vmem %s5, 4
        %v331 = vld [vmem:[%s330] sm:$0x3]
        %v333 = vperm.slane %v331, 0
        %v334 = vperm.slane %v331, 1
        %v337 = vmul.f32 %v329, %v333
        %v338 = vmul.f32 %v328, %v334
        %339 = vrot.lane.b32.xlu0 %v288, 1
        %v340 = vpop.permute.xlu0 %339
        %341 = vrot.lane.b32.xlu0 %v289, 1
        %v342 = vpop.permute.xlu0 %341
        %vm343 = vcmp.lt.s32.totalorder %v295, 1
        %v344 = vsel %vm343, %v340, %v342
        %v345 = vsel %vm343, %v342, %v340
        %s346 = scalar_lea.vmem %s5, 6
        %v347 = vld [vmem:[%s346] sm:$0x3]
        %v349 = vperm.slane %v347, 0
        %v350 = vperm.slane %v347, 1
        %v353 = vmul.f32 %v345, %v349
        %v354 = vmul.f32 %v344, %v350
        %355 = vrot.lane.b32.xlu0 %v288, 127
        %v356 = vpop.permute.xlu0 %355
        %357 = vrot.lane.b32.xlu0 %v289, 127
        %v358 = vpop.permute.xlu0 %357
        %vm359 = vcmp.lt.s32.totalorder %v295, 127
        %v360 = vsel %vm359, %v356, %v358
        %v361 = vsel %vm359, %v358, %v356
        %s362 = scalar_lea.vmem %s5, 10
        %v363 = vld [vmem:[%s362] sm:$0x3]
        %v365 = vperm.slane %v363, 0
        %v366 = vperm.slane %v363, 1
        %v369 = vmul.f32 %v360, %v365
        %v370 = vmul.f32 %v361, %v366
        %371 = vrot.lane.b32.xlu0 %v288, 113
        %v372 = vpop.permute.xlu0 %371
        %373 = vrot.lane.b32.xlu0 %v289, 113
        %v374 = vpop.permute.xlu0 %373
        %vm375 = vcmp.lt.s32.totalorder %v295, 113
        %v376 = vsel %vm375, %v372, %v374
        %v377 = vsel %vm375, %v374, %v372
        %s378 = scalar_lea.vmem %s5, 12
        %v379 = vld [vmem:[%s378] sm:$0x3]
        %v381 = vperm.slane %v379, 0
        %v382 = vperm.slane %v379, 1
        %v385 = vmul.f32 %v376, %v381
        %v386 = vmul.f32 %v377, %v382
        %387 = vrot.lane.b32.xlu0 %v288, 112
        %v388 = vpop.permute.xlu0 %387
        %389 = vrot.lane.b32.xlu0 %v289, 112
        %v390 = vpop.permute.xlu0 %389
        %vm391 = vcmp.lt.s32.totalorder %v295, 112
        %v392 = vsel %vm391, %v388, %v390
        %v393 = vsel %vm391, %v390, %v388
        %s394 = scalar_lea.vmem %s5, 14
        %v395 = vld [vmem:[%s394] sm:$0x3]
        %v397 = vperm.slane %v395, 0
        %v398 = vperm.slane %v395, 1
        %v401 = vmul.f32 %v392, %v397
        %v402 = vmul.f32 %v393, %v398
        %403 = vrot.lane.b32.xlu0 %v288, 111
        %v404 = vpop.permute.xlu0 %403
        %405 = vrot.lane.b32.xlu0 %v289, 111
        %v406 = vpop.permute.xlu0 %405
        %vm407 = vcmp.lt.s32.totalorder %v295, 111
        %v408 = vsel %vm407, %v404, %v406
        %v409 = vsel %vm407, %v406, %v404
        %s410 = scalar_lea.vmem %s5, 16
        %v411 = vld [vmem:[%s410] sm:$0x3]
        %v413 = vperm.slane %v411, 0
        %v414 = vperm.slane %v411, 1
        %v417 = vmul.f32 %v408, %v413
        %v418 = vmul.f32 %v409, %v414
        %v419 = vld [vmem:[%s1] sm:$0xf]
        %v420 = vpack.c.bf16 %v321, %v305
        %v421 = vpack.c.bf16 %v322, %v306
        %v422 = vpack.c.bf16 %v353, %v337
        %v423 = vpack.c.bf16 %v354, %v338
        %v424 = vpack.c.bf16 %v369, %v288
        %v425 = vpack.c.bf16 %v370, %v289
        %v426 = vpack.c.bf16 %v401, %v385
        %v427 = vpack.c.bf16 %v402, %v386
        %v428 = vpack.c.bf16 %v417, %v417
        %v429 = vpack.c.bf16 %v418, %v418
        %v430 = vld [vmem:[%s3] sm:$0xff]
        %432 = vset.pattern.permute.xlu0 0
        %433 = vperm.xlu0 %432, %v430
        %v434 = vpop.permute.xlu0 %433
        %vm436 = vcmask 588800
        %v438 = vsel %vm436, %v419, 0
        %vm440 = vcmask 1043456
        %v442 = vsel %vm440, %v428, 0
        %v445 = vsel %vm440, %v429, 0
        %447 = vmatpush.bf16.msra.mxu0 0
        %448 = vmatpush.bf16.msra.mxu0 0
        %449 = vmatpush.bf16.msra.mxu0 0
        %450 = vmatpush.bf16.msra.mxu0 %v442
        %451 = vmatpush.bf16.msra.mxu0 %v426
        %452 = vmatpush.bf16.msra.mxu0 %v424
        %453 = vmatpush.bf16.msra.mxu0 %v422
        %454 = vmatpush.bf16.msra.mxu0 %v420
        %455 = vmatmul.bf16.gmra.mxu0 %v438
        %v456 = vpop.f32.mrf.mxu0
        %v457 = vadd.f32 %v434, %v456
        %v458 = vpop.f32.mrf.mxu0
        %459 = vdwg.mxu0
        %460 = vmatpush.bf16.msra.mxu0 0
        %461 = vmatpush.bf16.msra.mxu0 0
        %462 = vmatpush.bf16.msra.mxu0 0
        %463 = vmatpush.bf16.msra.mxu0 %v445
        %464 = vmatpush.bf16.msra.mxu0 %v427
        %465 = vmatpush.bf16.msra.mxu0 %v425
        %466 = vmatpush.bf16.msra.mxu0 %v423
        %467 = vmatpush.bf16.msra.mxu0 %v421
        %468 = vmatmul.bf16.gmra.mxu0 %v438
        %v469 = vpop.f32.mrf.mxu0
        %v470 = vadd.f32 %v434, %v469
        %v471 = vpop.f32.mrf.mxu0
        %472 = vdwg.mxu0
        %v473 = vmax.f32 %v457, 0.0
        %v474 = vmax.f32 %v470, 0.0
        %475 = vrot.lane.b32.xlu0 %v473, 17
        %v476 = vpop.permute.xlu0 %475
        %477 = vrot.lane.b32.xlu0 %v474, 17
        %v478 = vpop.permute.xlu0 %477
        %v479 = vsel %vm296, %v476, %v478
        %v480 = vsel %vm296, %v478, %v476
        %v481 = vmul.f32 %v480, %v301
        %v482 = vmul.f32 %v479, %v302
        %483 = vrot.lane.b32.xlu0 %v473, 16
        %v484 = vpop.permute.xlu0 %483
        %485 = vrot.lane.b32.xlu0 %v474, 16
        %v486 = vpop.permute.xlu0 %485
        %v487 = vsel %vm311, %v484, %v486
        %v488 = vsel %vm311, %v486, %v484
        %v489 = vmul.f32 %v488, %v317
        %v490 = vmul.f32 %v487, %v318
        %491 = vrot.lane.b32.xlu0 %v473, 15
        %v492 = vpop.permute.xlu0 %491
        %493 = vrot.lane.b32.xlu0 %v474, 15
        %v494 = vpop.permute.xlu0 %493
        %v495 = vsel %vm327, %v492, %v494
        %v496 = vsel %vm327, %v494, %v492
        %v497 = vmul.f32 %v496, %v333
        %v498 = vmul.f32 %v495, %v334
        %499 = vrot.lane.b32.xlu0 %v473, 1
        %v500 = vpop.permute.xlu0 %499
        %501 = vrot.lane.b32.xlu0 %v474, 1
        %v502 = vpop.permute.xlu0 %501
        %v503 = vsel %vm343, %v500, %v502
        %v504 = vsel %vm343, %v502, %v500
        %v505 = vmul.f32 %v504, %v349
        %v506 = vmul.f32 %v503, %v350
        %507 = vrot.lane.b32.xlu0 %v473, 127
        %v508 = vpop.permute.xlu0 %507
        %509 = vrot.lane.b32.xlu0 %v474, 127
        %v510 = vpop.permute.xlu0 %509
        %v511 = vsel %vm359, %v508, %v510
        %v512 = vsel %vm359, %v510, %v508
        %v513 = vmul.f32 %v511, %v365
        %v514 = vmul.f32 %v512, %v366
        %515 = vrot.lane.b32.xlu0 %v473, 113
        %v516 = vpop.permute.xlu0 %515
        %517 = vrot.lane.b32.xlu0 %v474, 113
        %v518 = vpop.permute.xlu0 %517
        %v519 = vsel %vm375, %v516, %v518
        %v520 = vsel %vm375, %v518, %v516
        %v521 = vmul.f32 %v519, %v381
        %v522 = vmul.f32 %v520, %v382
        %523 = vrot.lane.b32.xlu0 %v473, 112
        %v524 = vpop.permute.xlu0 %523
        %525 = vrot.lane.b32.xlu0 %v474, 112
        %v526 = vpop.permute.xlu0 %525
        %v527 = vsel %vm391, %v524, %v526
        %v528 = vsel %vm391, %v526, %v524
        %v529 = vmul.f32 %v527, %v397
        %v530 = vmul.f32 %v528, %v398
        %531 = vrot.lane.b32.xlu0 %v473, 111
        %v532 = vpop.permute.xlu0 %531
        %533 = vrot.lane.b32.xlu0 %v474, 111
        %v534 = vpop.permute.xlu0 %533
        %v535 = vsel %vm407, %v532, %v534
        %v536 = vsel %vm407, %v534, %v532
        %v537 = vmul.f32 %v535, %v413
        %v538 = vmul.f32 %v536, %v414
        %v539 = vld [vmem:[#allocation5] sm:$0xf]
        %v540 = vpack.c.bf16 %v489, %v481
        %v541 = vpack.c.bf16 %v490, %v482
        %v542 = vpack.c.bf16 %v505, %v497
        %v543 = vpack.c.bf16 %v506, %v498
        %v544 = vpack.c.bf16 %v513, %v473
        %v545 = vpack.c.bf16 %v514, %v474
        %v546 = vpack.c.bf16 %v529, %v521
        %v547 = vpack.c.bf16 %v530, %v522
        %v548 = vpack.c.bf16 %v537, %v537
        %v549 = vpack.c.bf16 %v538, %v538
        %v550 = vld [vmem:[%s4] sm:$0xff]
        %552 = vset.pattern.permute.xlu0 0
        %553 = vperm.xlu0 %552, %v550
        %v554 = vpop.permute.xlu0 %553
        %v557 = vsel %vm436, %v539, 0
        %v560 = vsel %vm440, %v548, 0
        %v563 = vsel %vm440, %v549, 0
        %565 = vmatpush.bf16.msra.mxu0 0
        %566 = vmatpush.bf16.msra.mxu0 0
        %567 = vmatpush.bf16.msra.mxu0 0
        %568 = vmatpush.bf16.msra.mxu0 %v560
        %569 = vmatpush.bf16.msra.mxu0 %v546
        %570 = vmatpush.bf16.msra.mxu0 %v544
        %571 = vmatpush.bf16.msra.mxu0 %v542
        %572 = vmatpush.bf16.msra.mxu0 %v540
        %573 = vmatmul.bf16.gmra.mxu0 %v557
        %v574 = vpop.f32.mrf.mxu0
        %v575 = vadd.f32 %v554, %v574
        %v576 = vpop.f32.mrf.mxu0
        %577 = vdwg.mxu0
        %578 = vmatpush.bf16.msra.mxu0 0
        %579 = vmatpush.bf16.msra.mxu0 0
        %580 = vmatpush.bf16.msra.mxu0 0
        %581 = vmatpush.bf16.msra.mxu0 %v563
        %582 = vmatpush.bf16.msra.mxu0 %v547
        %583 = vmatpush.bf16.msra.mxu0 %v545
        %584 = vmatpush.bf16.msra.mxu0 %v543
        %585 = vmatpush.bf16.msra.mxu0 %v541
        %586 = vmatmul.bf16.gmra.mxu0 %v557
        %v587 = vpop.f32.mrf.mxu0
        %v588 = vadd.f32 %v554, %v587
        %v589 = vpop.f32.mrf.mxu0
        %590 = vdwg.mxu0
        %v591 = vadd.f32 %v575, %v288
        %v592 = vadd.f32 %v588, %v289
        %v593 = vmax.f32 %v591, 0.0
        %v594 = vmax.f32 %v592, 0.0
        %595 = vst [vmem:[%s284] sm:$0xff] %v593
        %596 = vst [vmem:[%s284 + $0x8] sm:$0xff] %v594
        %s597 = sand.u32 %s163, 1
        %s598 = scalar_lea.sflag [#allocation4], %s597
        %s599 = sand.u32 %s163, 1
        %s600 = smul.addr %s599, 16
        %s601 = scalar_lea.vmem [#allocation7], %s600
        // Predicated region
        $region53: #{tpu_custom_call.1} parent=43 // pred_check
          %p602 = pneg %p173
        $region54: #{tpu_custom_call.1} parent=43 // pred_check_branch
          %604 = sbr.rel (%p602) target = $region56
        $region55: #{tpu_custom_call.1} parent=43 // pred_region
          %s605 = smul.u32 2, %s24
          %607 = vsyncadd %s598, 0
          %s608 = smul.addr %s605, 8
          %s609 = scalar_lea.hbm %s6, %s608
          %s611 = sshll.u32 %s601, 4
          %s612 = int_to_ptr.vmem [resolvable:$true] %s611
          %s613 = sshll.u32 %s609, 4
          %s614 = int_to_ptr.hbm [resolvable:$true] %s613
          %616 = dma.vmem_to_hbm [thread:$0]  %s612, 256, %s614, %s598
        $region56: #{tpu_custom_call.1} parent=43 // pred_fallthru
          _
      $region44: #{tpu_custom_call.1} parent=5 // pred_fallthru
        _
      %p617 = scmp.le.s32.totalorder 2, %s19
      // Predicated region
      $region57: #{tpu_custom_call.1} parent=5 // pred_check
        %p618 = pneg %p617
      $region58: #{tpu_custom_call.1} parent=5 // pred_check_branch
        %620 = sbr.rel (%p618) target = $region60
      $region59: #{tpu_custom_call.1} parent=5 // pred_region
        %s621 = ssub.s32 %s19, 2
        // Predicated region
        $region61: #{tpu_custom_call.1} parent=59 // pred_check
          %p622 = pneg %p179
        $region62: #{tpu_custom_call.1} parent=59 // pred_check_branch
          %624 = sbr.rel (%p622) target = $region64
        $region63: #{tpu_custom_call.1} parent=59 // pred_region
          %s625 = sand.u32 %s164, 1
          %s626 = scalar_lea.sflag [#allocation4], %s625
          %s627 = sand.u32 %s164, 1
          %s628 = smul.addr %s627, 16
          %s629 = scalar_lea.vmem [#allocation7], %s628
          %631 = dma.done %s626, 256
        $region64: #{tpu_custom_call.1} parent=59 // pred_fallthru
          _
      $region60: #{tpu_custom_call.1} parent=5 // pred_fallthru
        _
    $region6: #{tpu_custom_call.1} parent=1 // loop_footer
      %s23 = sadd.s32 1, %s19
    $region7: #{tpu_custom_call.1} parent=1 // loop_footer_branch
      %18 = sbr.rel target = $region3
    $region8: #{tpu_custom_call.1} parent=1 // loop_exit
      _
    %632 = vsyncpa [#allocation3], 1
    %s633 = scalar_lea.sflag [#allocation3], 1
    %634 = vsyncpa %s633, 1
    %635 = vsyncpa [#allocation6], 1
    %636 = vsyncpa [#allocation4], 1
    %s637 = scalar_lea.sflag [#allocation4], 1
    %638 = vsyncpa %s637, 1

</llo_original>
